<compile_context>
chip_gen: v7x
topology: tpu7x:2x2x1
jax: 0.10.0
libtpu: 0.0.40
codegen_flags: <defaults>
</compile_context>

<pallas_src>
import functools

import jax
import jax.numpy as jnp
from jax import lax
from jax.experimental import pallas as pl
from jax.experimental.pallas import tpu as pltpu


EPS = 1e-5

_FALLBACK_VMEM_CAP = 64 * 1024 * 1024          # assume v7x-sized VMEM if query fails
# Compute-heavy blocks (fused norm / stats reduction) keep a smaller target so
# in-kernel f32 temporaries never push the pipeline over the VMEM limit.
_REDUCE_TARGET_BLOCK_BYTES = 2 * 1024 * 1024
# A single (sublane, L) slab above this switches the norm to the two-pass path.
_MAX_FUSED_BLOCK_BYTES = 2 * 1024 * 1024


# --------------------------------------------------------------------------
# Small helpers
# --------------------------------------------------------------------------
def _round_up(x, m):
    return ((x + m - 1) // m) * m


def _sublane(dtype):
    """Dtype-aware sublane packing multiple: f32 -> 8, bf16 -> 16, int8 -> 32."""
    return max(8, 32 // max(1, jnp.dtype(dtype).itemsize))


@functools.lru_cache(maxsize=None)
def _vmem_limit_bytes():
    cap = None
    try:
        cap = getattr(pltpu.get_tpu_info(), "vmem_capacity_bytes", None)
    except Exception:
        cap = None
    if not cap:
        cap = _FALLBACK_VMEM_CAP
    # ~60% of physical VMEM: ~76 MiB on v5e/v6e (128 MiB), ~38 MiB on v7x (64 MiB).
    return int(min(96 * 1024 * 1024, max(32 * 1024 * 1024, cap * 3 // 5)))


@functools.lru_cache(maxsize=None)
def _default_target_block_bytes():
    # Past the DMA-amortization knee everywhere; larger blocks only where the
    # chip has the VMEM headroom (v5e/v6e).
    return 6 * 1024 * 1024 if _vmem_limit_bytes() >= 64 * 1024 * 1024 else 4 * 1024 * 1024


def _compiler_params(dimension_semantics):
    return pltpu.CompilerParams(
        dimension_semantics=dimension_semantics,
        vmem_limit_bytes=_vmem_limit_bytes(),
    )


def _pick_row_tile(n_rows, row_bytes, dtype, target_block_bytes):
    """Rows per grid step.  Guarantees >=2 steps whenever legally possible."""
    sub = _sublane(dtype)
    if n_rows <= sub:
        return n_rows                         # full dim -> always a legal block
    max_tr = (n_rows // sub) * sub            # largest packed multiple <= n_rows
    total = n_rows * row_bytes
    if total >= 8 * 1024 * 1024:
        min_steps = 8                         # >= 4 steps per v7x TensorCore
    elif total >= 2 * 1024 * 1024:
        min_steps = 4
    else:
        min_steps = 2                         # always give the pipeline >= 2 steps
    cap = max(sub, (target_block_bytes // max(1, row_bytes)) // sub * sub)
    want = _round_up(pl.cdiv(n_rows, min_steps), sub)
    return max(sub, min(cap, want, max_tr))


def _pick_l_tile(seq_len, row_tile, itemsize, target_block_bytes):
    """Lane-chunk size (multiple of 128, or the whole of L)."""
    tl = (target_block_bytes // max(1, row_tile * itemsize)) // 128 * 128
    tl = max(128, tl)
    return seq_len if tl >= seq_len else tl


def _check_3d(x):
    # PyTorch: if x.dim() != 3: x = x.unsqueeze(1)
    if x.ndim != 3:
        x = jnp.expand_dims(x, 1)
    return x


# --------------------------------------------------------------------------
# Kernels
# --------------------------------------------------------------------------
def _pack_two(a, b):
    """Pack two (tr, 1) f32 columns into a (tr, 2) slab (no concat / partial stores)."""
    col = lax.broadcasted_iota(jnp.int32, (a.shape[0], 2), 1)
    return jnp.where(col == 0, a, b)


def _revin_norm_fused_kernel(x_ref, wb_ref, out_ref, stats_ref, *, eps):
    """One-pass 'norm': stats + normalize + affine for a (tr, L) row block."""
    x = x_ref[...]                                                    # native dtype

    # Per-row statistics, accumulated in float32 (two-pass, numerically safe).
    mean = jnp.mean(x, axis=-1, keepdims=True, dtype=jnp.float32)     # (tr, 1) f32
    xc = x - mean.astype(x.dtype)                                     # centered, native dtype
    var = jnp.mean(xc * xc, axis=-1, keepdims=True, dtype=jnp.float32)
    std = jnp.sqrt(var + eps)                                         # (tr, 1) f32

    # Fold affine + inv-std into one per-row scale; out = xc*scale + b (1 FMA/elem).
    wb = wb_ref[...]                                                  # (tr, 2) f32
    w = wb[:, 0:1]
    b = wb[:, 1:2]
    scale = w / std                                                   # O(tr) exact divide
    out = xc * scale.astype(x.dtype) + b.astype(x.dtype)
    out_ref[...] = out.astype(out_ref.dtype)

    stats_ref[...] = _pack_two(mean, std)                             # (tr, 2) f32


def _row_stats_kernel(x_ref, stats_ref, sum_sc, sumsq_sc, *, eps, seq_len, l_tile):
    """L-chunked per-row mean/std: accumulate sum / sum-of-squares in f32 scratch."""
    l = pl.program_id(1)
    nl = pl.num_programs(1)

    @pl.when(l == 0)
    def _():
        sum_sc[...] = jnp.zeros_like(sum_sc)
        sumsq_sc[...] = jnp.zeros_like(sumsq_sc)

    x = x_ref[...].astype(jnp.float32)                                # (tr, tl)
    rem = seq_len % l_tile
    if rem:
        # Mask the ragged tail chunk (partial input blocks carry stale lanes).
        col = lax.broadcasted_iota(jnp.int32, x.shape, 1)
        valid = jnp.where(l == nl - 1, rem, l_tile)
        x = jnp.where(col < valid, x, 0.0)
    sum_sc[...] += jnp.sum(x, axis=-1, keepdims=True)
    sumsq_sc[...] += jnp.sum(x * x, axis=-1, keepdims=True)

    @pl.when(l == nl - 1)
    def _():
        inv_n = 1.0 / seq_len
        mean = sum_sc[...] * inv_n
        var = jnp.maximum(sumsq_sc[...] * inv_n - mean * mean, 0.0)
        std = jnp.sqrt(var + eps)
        stats_ref[...] = _pack_two(mean, std)


def _row_affine_kernel(x_ref, ss_ref, out_ref):
    """out = x * scale + shift with per-row (scale, shift) packed in ss_ref."""
    x = x_ref[...]
    ss = ss_ref[...]                                                  # (tr, 2) f32
    scale = ss[:, 0:1].astype(x.dtype)
    shift = ss[:, 1:2].astype(x.dtype)
    out_ref[...] = (x * scale + shift).astype(out_ref.dtype)


# --------------------------------------------------------------------------
# Wrappers
# --------------------------------------------------------------------------
def _rowwise_affine(x2d, scale_shift, out_dtype, target_block_bytes,
                    input_output_aliases=None):
    """out[r, :] = x[r, :] * scale[r] + shift[r]  (streaming, 1 FMA / element)."""
    R, L = x2d.shape
    itemsize = jnp.dtype(x2d.dtype).itemsize
    tr = _pick_row_tile(R, L * itemsize, x2d.dtype, target_block_bytes)
    if tr * L * itemsize > target_block_bytes:
        tl = _pick_l_tile(L, tr, itemsize, target_block_bytes)
    else:
        tl = L
    grid = (pl.cdiv(R, tr), pl.cdiv(L, tl))
    return pl.pallas_call(
        _row_affine_kernel,
        out_shape=jax.ShapeDtypeStruct((R, L), out_dtype),
        grid=grid,
        in_specs=[pl.BlockSpec((tr, tl), lambda i, l: (i, l)),
                  pl.BlockSpec((tr, 2), lambda i, l: (i, 0))],
        out_specs=pl.BlockSpec((tr, tl), lambda i, l: (i, l)),
        compiler_params=_compiler_params(("parallel", "parallel")),
        input_output_aliases=(input_output_aliases or {}),
    )(x2d, scale_shift)


def revin_norm(x, affine_weight, affine_bias, eps=EPS, *,
               target_block_bytes=None, max_fused_block_bytes=None):
    """mode == 'norm'.  Returns (x_norm, mean, stdev); mean/stdev are fp32."""
    x = _check_3d(x)
    B, C, L = x.shape
    R = B * C
    x2d = x.reshape(R, L)
    itemsize = jnp.dtype(x.dtype).itemsize

    if target_block_bytes is None:
        target_block_bytes = _default_target_block_bytes()
    if max_fused_block_bytes is None:
        max_fused_block_bytes = _MAX_FUSED_BLOCK_BYTES

    # Per-row (w, b) packed into one (R, 2) f32 side stream (row r -> channel r % C).
    wb = jnp.tile(jnp.stack([affine_weight.astype(jnp.float32),
                             affine_bias.astype(jnp.float32)], axis=-1), (B, 1))

    sub = _sublane(x.dtype)
    fused = sub * L * itemsize <= max_fused_block_bytes

    if fused:
        fused_target = min(target_block_bytes, _REDUCE_TARGET_BLOCK_BYTES)
        tr = _pick_row_tile(R, L * itemsize, x.dtype, fused_target)
        grid = (pl.cdiv(R, tr),)
        out, stats = pl.pallas_call(
            functools.partial(_revin_norm_fused_kernel, eps=eps),
            out_shape=(jax.ShapeDtypeStruct((R, L), x.dtype),
                       jax.ShapeDtypeStruct((R, 2), jnp.float32)),
            grid=grid,
            in_specs=[pl.BlockSpec((tr, L), lambda i: (i, 0)),
                      pl.BlockSpec((tr, 2), lambda i: (i, 0))],
            out_specs=(pl.BlockSpec((tr, L), lambda i: (i, 0)),
                       pl.BlockSpec((tr, 2), lambda i: (i, 0))),
            compiler_params=_compiler_params(("parallel",)),
        )(x2d, wb)
    else:
        # Long-sequence path: pass 1 accumulates sum / sum-of-squares over L
        # chunks, pass 2 applies the folded per-row scale/shift.
        stats_target = min(target_block_bytes, 4 * 1024 * 1024)
        tr = R if R <= sub else sub
        tl = _pick_l_tile(L, tr, itemsize, stats_target)
        grid = (pl.cdiv(R, tr), pl.cdiv(L, tl))
        stats = pl.pallas_call(
            functools.partial(_row_stats_kernel, eps=eps, seq_len=L, l_tile=tl),
            out_shape=jax.ShapeDtypeStruct((R, 2), jnp.float32),
            grid=grid,
            in_specs=[pl.BlockSpec((tr, tl), lambda i, l: (i, l))],
            out_specs=pl.BlockSpec((tr, 2), lambda i, l: (i, 0)),
            scratch_shapes=[pltpu.VMEM((tr, 1), jnp.float32),
                            pltpu.VMEM((tr, 1), jnp.float32)],
            compiler_params=_compiler_params(("parallel", "arbitrary")),
        )(x2d)
        mean_col = stats[:, 0:1]
        std_col = stats[:, 1:2]
        scale = wb[:, 0:1] / std_col                  # O(R) XLA work
        shift = wb[:, 1:2] - mean_col * scale
        ss = jnp.concatenate([scale, shift], axis=-1)  # (R, 2) f32
        out = _rowwise_affine(x2d, ss, x.dtype, target_block_bytes)

    mean = stats[:, 0:1].reshape(B, C, 1)
    stdev = stats[:, 1:2].reshape(B, C, 1)
    return out.reshape(B, C, L), mean, stdev


def revin_denorm(x, mean, stdev, affine_weight, affine_bias, eps=EPS, *,
                 target_block_bytes=None, donate_x=False):
    """mode == 'denorm'.  x: (B, C, L); mean/stdev: (B, C, 1).

    Set donate_x=True to alias the x buffer to the output (halves HBM
    footprint); only safe when the caller does not reuse x afterwards.
    """
    x = _check_3d(x)
    B, C, L = x.shape
    R = B * C
    x2d = x.reshape(R, L)
    if target_block_bytes is None:
        target_block_bytes = _default_target_block_bytes()

    mean_r = mean.reshape(R, 1).astype(jnp.float32)
    std_r = stdev.reshape(R, 1).astype(jnp.float32)
    w_r = jnp.tile(affine_weight.astype(jnp.float32), B).reshape(R, 1)
    b_r = jnp.tile(affine_bias.astype(jnp.float32), B).reshape(R, 1)

    # Fold everything into one per-row scale/shift (O(R) work, done once):
    #   out = (x - b)/(w + eps^2) * std + mean  ==  x*scale + shift
    scale = std_r / (w_r + eps * eps)
    shift = mean_r - b_r * scale
    ss = jnp.concatenate([scale, shift], axis=-1)      # (R, 2) f32

    out = _rowwise_affine(x2d, ss, x.dtype, target_block_bytes,
                          input_output_aliases=({0: 0} if donate_x else None))
    return out.reshape(B, C, L)


# --------------------------------------------------------------------------
# Pure-JAX reference (mirrors the PyTorch module)
# --------------------------------------------------------------------------
def revin_norm_ref(x, w, b, eps=EPS):
    mean = jnp.mean(x, axis=2, keepdims=True)
    var = jnp.var(x, axis=2, keepdims=True)            # ddof=0 == unbiased=False
    std = jnp.sqrt(var + eps)
    xn = (x - mean) / std
    xn = xn * w[None, :, None] + b[None, :, None]
    return xn, mean, std


def revin_denorm_ref(x, mean, std, w, b, eps=EPS):
    x = x - b[None, :, None]
    x = x / (w[None, :, None] + eps * eps)
    return x * std + mean


# --------------------------------------------------------------------------
# Main
# --------------------------------------------------------------------------
if __name__ == "__main__":
    key = jax.random.PRNGKey(0)

    def run_case(B, C, L, subkey, dtype=jnp.float32,
                 out_tol=1e-5, stats_tol=1e-5, **kw):
        xf = jax.random.normal(subkey, (B, C, L), dtype=jnp.float32) * 3.0 + 1.5
        x = xf.astype(dtype)
        affine_weight = (jnp.ones((C,), jnp.float32)
                         + 0.1 * jnp.arange(C, dtype=jnp.float32))
        affine_bias = 0.05 * jnp.arange(C, dtype=jnp.float32)

        norm_kw = dict(kw)
        denorm_kw = {k: v for k, v in kw.items() if k != "max_fused_block_bytes"}

        # mode == 'norm'
        x_norm, mean, stdev = revin_norm(x, affine_weight, affine_bias, **norm_kw)
        x_norm = jax.block_until_ready(x_norm)

        # mode == 'denorm'
        x_denorm = revin_denorm(x_norm, mean, stdev, affine_weight, affine_bias,
                                **denorm_kw)
        x_denorm = jax.block_until_ready(x_denorm)

        # Pure-JAX reference of the PyTorch semantics (in f32).
        xr, mr, sr = revin_norm_ref(xf, affine_weight, affine_bias)
        dr = revin_denorm_ref(xr, mr, sr, affine_weight, affine_bias)

        assert x_norm.shape == (B, C, L) and x_norm.dtype == jnp.dtype(dtype)
        assert mean.shape == (B, C, 1) and stdev.shape == (B, C, 1)
        assert jnp.allclose(x_norm.astype(jnp.float32), xr, atol=out_tol, rtol=out_tol)
        assert jnp.allclose(mean, mr, atol=stats_tol, rtol=stats_tol)
        assert jnp.allclose(stdev, sr, atol=stats_tol, rtol=stats_tol)
        assert jnp.allclose(x_denorm.astype(jnp.float32), dr, atol=out_tol, rtol=out_tol)
        # Round-trip should recover the original signal (up to eps^2 in w).
        rt_tol = 1e-3 if dtype == jnp.float32 else 1.5e-1
        assert jnp.allclose(x_denorm.astype(jnp.float32), xf, atol=rt_tol, rtol=rt_tol)

    keys = jax.random.split(key, 5)
    # Fused one-pass path.
    run_case(B=2, C=4, L=16, subkey=keys[0])       # small canonical case
    run_case(B=3, C=5, L=128, subkey=keys[1])      # R=15: ragged row blocks, 2 grid steps
    # bf16 compute path (f32-accumulated stats, bf16 FMA + store).
    run_case(B=2, C=4, L=256, subkey=keys[2], dtype=jnp.bfloat16,
             out_tol=7e-2, stats_tol=7e-2)
    # Long-sequence (L-chunked) two-pass path, forced via tiny block budgets.
    run_case(B=2, C=4, L=512, subkey=keys[3],
             target_block_bytes=4096, max_fused_block_bytes=0, stats_tol=1e-4)
    run_case(B=1, C=8, L=500, subkey=keys[4],      # ragged L tail in the chunked path
             target_block_bytes=4096, max_fused_block_bytes=0,
             stats_tol=1e-4, out_tol=1e-4)

    print("KERNEL_OK")
</pallas_src>

<mosaic_0001>
module attributes {stable_mosaic.version = 11 : i64} {
  func.func @_revin_norm_fused_kernel(%arg0: i32, %arg1: memref<8x16xf32, #tpu.memory_space<vmem>>, %arg2: memref<8x2xf32, #tpu.memory_space<vmem>>, %arg3: memref<8x16xf32, #tpu.memory_space<vmem>>, %arg4: memref<8x2xf32, #tpu.memory_space<vmem>>) attributes {dimension_semantics = [#tpu.dimension_semantics<parallel>], iteration_bounds = array<i64: 1>, scalar_prefetch = 0 : i64, scratch_operands = 0 : i64, tpu.core_type = #tpu.core_type<tc>, window_params = [{transform_indices = @transform_0, window_bounds = array<i64: 8, 16>}, {transform_indices = @transform_1, window_bounds = array<i64: 8, 2>}, {transform_indices = @transform_2, window_bounds = array<i64: 8, 16>}, {transform_indices = @transform_3, window_bounds = array<i64: 8, 2>}]} {
    %c0 = arith.constant 0 : index
    %c0_0 = arith.constant 0 : index
    %0 = vector.load %arg1[%c0, %c0_0] : memref<8x16xf32, #tpu.memory_space<vmem>>, vector<8x16xf32>
    %cst = arith.constant dense<0.000000e+00> : vector<8xf32>
    %1 = vector.multi_reduction <add>, %0, %cst [1] : vector<8x16xf32> to vector<8xf32>
    %2 = vector.shape_cast %1 : vector<8xf32> to vector<8x1xf32>
    %cst_1 = arith.constant 1.600000e+01 : f32
    %3 = vector.broadcast %cst_1 : f32 to vector<8x1xf32>
    %4 = arith.divf %2, %3 : vector<8x1xf32>
    %5 = vector.broadcast %4 : vector<8x1xf32> to vector<8x16xf32>
    %6 = arith.subf %0, %5 : vector<8x16xf32>
    %7 = arith.mulf %6, %6 : vector<8x16xf32>
    %cst_2 = arith.constant dense<0.000000e+00> : vector<8xf32>
    %8 = vector.multi_reduction <add>, %7, %cst_2 [1] : vector<8x16xf32> to vector<8xf32>
    %9 = vector.shape_cast %8 : vector<8xf32> to vector<8x1xf32>
    %cst_3 = arith.constant 1.600000e+01 : f32
    %10 = vector.broadcast %cst_3 : f32 to vector<8x1xf32>
    %11 = arith.divf %9, %10 : vector<8x1xf32>
    %cst_4 = arith.constant 9.99999974E-6 : f32
    %12 = vector.broadcast %cst_4 : f32 to vector<8x1xf32>
    %13 = arith.addf %11, %12 : vector<8x1xf32>
    %14 = math.sqrt %13 : vector<8x1xf32>
    %c0_5 = arith.constant 0 : index
    %c0_6 = arith.constant 0 : index
    %15 = vector.load %arg2[%c0_5, %c0_6] : memref<8x2xf32, #tpu.memory_space<vmem>>, vector<8x2xf32>
    %16 = vector.extract_strided_slice %15 {offsets = [0, 0], sizes = [8, 1], strides = [1, 1]} : vector<8x2xf32> to vector<8x1xf32>
    %17 = vector.extract_strided_slice %15 {offsets = [0, 1], sizes = [8, 1], strides = [1, 1]} : vector<8x2xf32> to vector<8x1xf32>
    %18 = arith.divf %16, %14 : vector<8x1xf32>
    %19 = vector.broadcast %18 : vector<8x1xf32> to vector<8x16xf32>
    %20 = arith.mulf %6, %19 : vector<8x16xf32>
    %21 = vector.broadcast %17 : vector<8x1xf32> to vector<8x16xf32>
    %22 = arith.addf %20, %21 : vector<8x16xf32>
    %c0_7 = arith.constant 0 : index
    %c0_8 = arith.constant 0 : index
    %23 = vector.load %arg3[%c0_7, %c0_8] : memref<8x16xf32, #tpu.memory_space<vmem>>, vector<8x16xf32>
    tpu.vector_store %arg3[%c0_7, %c0_8], %22 {strides = array<i32>} : memref<8x16xf32, #tpu.memory_space<vmem>>, vector<8x16xf32>,
    %24 = tpu.iota {dimensions = array<i32: 1>} : vector<8x2xi32>
    %c0_i32 = arith.constant 0 : i32
    %25 = vector.broadcast %c0_i32 : i32 to vector<8x2xi32>
    %26 = arith.cmpi eq, %24, %25 : vector<8x2xi32>
    %27 = vector.shape_cast %4 : vector<8x1xf32> to vector<8x1xf32>
    %28 = vector.broadcast %27 : vector<8x1xf32> to vector<8x2xf32>
    %29 = vector.shape_cast %14 : vector<8x1xf32> to vector<8x1xf32>
    %30 = vector.broadcast %29 : vector<8x1xf32> to vector<8x2xf32>
    %31 = arith.select %26, %28, %30 : vector<8x2xi1>, vector<8x2xf32>
    %c0_9 = arith.constant 0 : index
    %c0_10 = arith.constant 0 : index
    %32 = vector.load %arg4[%c0_9, %c0_10] : memref<8x2xf32, #tpu.memory_space<vmem>>, vector<8x2xf32>
    tpu.vector_store %arg4[%c0_9, %c0_10], %31 {strides = array<i32>} : memref<8x2xf32, #tpu.memory_space<vmem>>, vector<8x2xf32>,
    return
  }
  func.func @transform_0(%arg0: i32) -> (i32, i32) {
    %c0_i32 = arith.constant 0 : i32
    %c0_i32_0 = arith.constant 0 : i32
    return %arg0, %c0_i32 : i32, i32
  }
  func.func @transform_1(%arg0: i32) -> (i32, i32) {
    %c0_i32 = arith.constant 0 : i32
    %c0_i32_0 = arith.constant 0 : i32
    return %arg0, %c0_i32 : i32, i32
  }
  func.func @transform_2(%arg0: i32) -> (i32, i32) {
    %c0_i32 = arith.constant 0 : i32
    %c0_i32_0 = arith.constant 0 : i32
    return %arg0, %c0_i32 : i32, i32
  }
  func.func @transform_3(%arg0: i32) -> (i32, i32) {
    %c0_i32 = arith.constant 0 : i32
    %c0_i32_0 = arith.constant 0 : i32
    return %arg0, %c0_i32 : i32, i32
  }
}

</mosaic_0001>

<llo_original>
// kernel: tpu_custom_call.1
$region0: #{tpu_custom_call.1}
  #allocation0 [shape = 'u32[]', space=smem, size = 0x4, offset = 0x4, fixed_abs, tag = 'smem constant byte address 0x4 - core index']
  #allocation1 [shape = 'u32[144,128]{1,0:T(1,128)}', space=vmem, size = 0x12000, scoped, tag = 'internal scratch']
  %s0 = inlined_call_operand.vmem [shape: f32[8,16], index: 0, kind: input, shape index: {}]
  %s1 = inlined_call_operand.vmem [shape: f32[8,2], index: 1, kind: input, shape index: {}]
  %s2 = inlined_call_operand.hbm [shape: f32[8,16], index: 2, kind: output, shape index: {0}]
  %s3 = inlined_call_operand.vmem [shape: f32[8,2], index: 3, kind: output, shape index: {1}]
  %4 = xla_tuple %s2, %s3
  %s5 = sld [smem:[#allocation0]]
  $region26: #{tpu_custom_call.1} parent=0
    _
  %s7 = ssub.s32 1, %s5
  %s8 = scalar_select 0, %s7, %s5
  $region1: #{tpu_custom_call.1} parent=0
    #allocation2 [shape = 'u8[4096]{0}', space=vmem, size = 0x1000, scoped, tag = 'output window, operand 0, single buffered']
    #allocation3 [shape = 's32[1]{0}', space=sflag, size = 0x4, scoped, tag = 'scoped memory for tpu_custom_call.1']
    %9 = vsyncpa [#allocation3], 0
    // Predicated region
    $region2: #{tpu_custom_call.1} parent=1 // pred_check
      _
    $region3: #{tpu_custom_call.1} parent=1 // pred_check_branch
      %11 = sbr.rel (0) target = $region5
    $region4: #{tpu_custom_call.1} parent=1 // pred_region
      _
    $region5: #{tpu_custom_call.1} parent=1 // pred_fallthru
      _
    // Predicated region
    $region6: #{tpu_custom_call.1} parent=1 // pred_check
      _
    $region7: #{tpu_custom_call.1} parent=1 // pred_check_branch
      %13 = sbr.rel (0) target = $region9
    $region8: #{tpu_custom_call.1} parent=1 // pred_region
      _
    $region9: #{tpu_custom_call.1} parent=1 // pred_fallthru
      _
    %v14 = vld [vmem:[%s0] sm:$0xff]
    %vm15 = vcmask 130048
    %v16 = vsel %vm15, %v14, 0.0
    %17 = vadd.xlane.f32.xlu0 %v16
    %v18 = vpop.xlane.xlu0 %17
    %v19 = vrcp.pop 16.0
    %v20 = vmul.f32 %v18, %v19
    %v21 = vsub.f32 %v14, %v20
    %v22 = vmul.f32 %v21, %v21
    %v23 = vsel %vm15, %v22, 0.0
    %24 = vadd.xlane.f32.xlu0 %v23
    %v25 = vpop.xlane.xlu0 %24
    %v26 = vmul.f32 %v25, %v19
    %v27 = vadd.f32 %v26, 1e-05
    %v28 = vrsqrt.pop %v27
    %v29 = vmul.f32 %v27, %v28
    %vm30 = vcmp.eq.f32.partialorder %v27, inf
    %v31 = vsel %vm30, %v27, %v29
    %vm32 = vcmp.eq.f32.partialorder %v27, 0.0
    %v33 = vand.u32 %v27, 2147483648
    %v34 = vsel %vm32, %v33, %v31
    %v35 = vld [vmem:[%s1] sm:$0xff]
    %v36 = vrcp.pop %v34
    %v37 = vmul.f32 %v35, %v36
    %39 = vset.pattern.permute.xlu0 0
    %40 = vperm.xlu0 %39, %v37
    %v41 = vpop.permute.xlu0 %40
    %v43 = vmul.f32 %v21, %v41
    %45 = vset.pattern.permute.xlu0 1
    %46 = vperm.xlu0 %45, %v35
    %v47 = vpop.permute.xlu0 %46
    %v49 = vadd.f32 %v43, %v47
    %50 = vst.msk [vmem:[#allocation2] sm:$0xff] %vm15, %v49
    %v51 = vlaneseq
    %v52 = vand.u32 %v51, 127
    %vm53 = vcmp.eq.s32.totalorder %v52, 0
    %v54 = vsel %vm53, %v20, %v34
    %vm55 = vcmask 15360
    %56 = vst.msk [vmem:[%s3] sm:$0xff] %vm55, %v54
    // Predicated region
    $region10: #{tpu_custom_call.1} parent=1 // pred_check
      _
    $region11: #{tpu_custom_call.1} parent=1 // pred_check_branch
      %58 = sbr.rel (0) target = $region13
    $region12: #{tpu_custom_call.1} parent=1 // pred_region
      %s60 = ssub.s32 128, 128
      %61 = vsyncadd [#allocation3], %s60
      %s63 = sshll.u32 [#allocation2], 4
      %s64 = int_to_ptr.vmem [resolvable:$true] %s63
      %66 = dma.vmem_to_hbm [thread:$0]  %s64, 128, %s2, [#allocation3]
    $region13: #{tpu_custom_call.1} parent=1 // pred_fallthru
      _
    // Predicated region
    $region14: #{tpu_custom_call.1} parent=1 // pred_check
      _
    $region15: #{tpu_custom_call.1} parent=1 // pred_check_branch
      %68 = sbr.rel (0) target = $region17
    $region16: #{tpu_custom_call.1} parent=1 // pred_region
      _
    $region17: #{tpu_custom_call.1} parent=1 // pred_fallthru
      _
    // Predicated region
    $region18: #{tpu_custom_call.1} parent=1 // pred_check
      _
    $region19: #{tpu_custom_call.1} parent=1 // pred_check_branch
      %70 = sbr.rel (0) target = $region21
    $region20: #{tpu_custom_call.1} parent=1 // pred_region
      %71 = dma.done [#allocation3], 128
    $region21: #{tpu_custom_call.1} parent=1 // pred_fallthru
      _
    // Predicated region
    $region22: #{tpu_custom_call.1} parent=1 // pred_check
      _
    $region23: #{tpu_custom_call.1} parent=1 // pred_check_branch
      %73 = sbr.rel (0) target = $region25
    $region24: #{tpu_custom_call.1} parent=1 // pred_region
      _
    $region25: #{tpu_custom_call.1} parent=1 // pred_fallthru
      _
    %74 = vsyncpa [#allocation3], 1

</llo_original>
